<compile_context>
chip_gen: v7x
topology: tpu7x:2x2x1
jax: 0.10.0
libtpu: 0.0.40
codegen_flags: <defaults>
</compile_context>

<pallas_src>
import math
import jax
import jax.numpy as jnp
from jax.experimental import pallas as pl
from jax.experimental.pallas import tpu as pltpu

_LANE = 128      # vreg lane width: output (N) dims padded to this
_SUBLANE = 8     # sublane granularity for the batch (M) tile


def _round_up(n, m):
    return ((n + m - 1) // m) * m


# ----------------------------- Pallas kernel -------------------------------
def _make_qmlp_kernel(n_layers):
    """Fused forward over an n_layers-deep (pre-composed) noisy-linear MLP.

    Ref layout:
      refs[0]           : x tile   (TM, obs_dim)    bf16
      refs[1 + 2*l + 0] : layer-l effective weight  (in_pad, out_pad)
                          bf16 for hidden layers, f32 for the output layer
      refs[1 + 2*l + 1] : layer-l effective bias    (1, out_pad) f32
      refs[-1]          : out tile (TM, out_pad)    f32
    """
    def kernel(*refs):
        x_ref, o_ref = refs[0], refs[-1]
        layer_refs = refs[1:-1]
        h = x_ref[...]
        for li in range(n_layers):
            w_ref, b_ref = layer_refs[2 * li], layer_refs[2 * li + 1]
            w = w_ref[...]
            # Hidden layers: bf16 MXU inputs + f32 accumulation.
            # Output layer: f32 weights for accurate Q-values.
            y = jnp.dot(h.astype(w.dtype), w,
                        preferred_element_type=jnp.float32) + b_ref[...]
            if li < n_layers - 1:
                y = jnp.maximum(y, 0.0)      # hidden activation: ReLU
            h = y                            # output activation: Identity
        o_ref[...] = h.astype(o_ref.dtype)
    return kernel


# --------------------- one-time parameter preparation ----------------------
def precompose_and_pad_params(params):
    """Compose W_eff = w_mu + w_sigma*w_eps and b_eff = b_mu + b_sigma*b_eps
    ONCE (per noise draw / parameter update) and zero-pad output dims to the
    128-lane width.

    Padding is exact: padded output columns have zero weight + zero bias, so
    padded activation columns are exactly 0 through ReLU and padded weight
    rows (for deeper layers) are 0.  The layer-0 input (K) dim is left at the
    true obs_dim so the only per-tile HBM input is not inflated.
    Hidden-layer weights are stored in bf16 (MXU input dtype); the output
    layer's weight stays f32.  Biases stay f32.
    """
    prepared = []
    n = len(params)
    prev_out_pad = None
    for li, p in enumerate(params):
        in_f, out_f = p["w_mu"].shape
        out_pad = _round_up(out_f, _LANE)
        in_pad = in_f if li == 0 else prev_out_pad
        w_dtype = jnp.float32 if li == n - 1 else jnp.bfloat16

        w_eff = (p["w_mu"] + p["w_sigma"] * p["w_eps"]).astype(w_dtype)
        b_eff = (p["b_mu"] + p["b_sigma"] * p["b_eps"]).astype(jnp.float32)

        w = jnp.zeros((in_pad, out_pad), w_dtype).at[:in_f, :out_f].set(w_eff)
        b = jnp.zeros((1, out_pad), jnp.float32).at[:, :out_f].set(b_eff)
        prepared.append({"w": w, "b": b, "out_features": out_f})
        prev_out_pad = out_pad
    return prepared


def _vmem_limit_bytes():
    """Generation-aware scoped-VMEM limit: physical minus headroom, capped at
    100 MiB (v5e/v6e have 128 MiB; v7x has 64 MiB per TensorCore)."""
    try:
        cap = getattr(pltpu.get_tpu_info(), "vmem_capacity_bytes", None)
        if cap:
            return int(min(cap - 8 * 1024 * 1024, 100 * 1024 * 1024))
    except Exception:
        pass
    return 48 * 1024 * 1024   # safe everywhere (under v7x's 64 MiB)


# ------------------------------ forward wrapper -----------------------------
def disc_noisy_qmlp_forward(x, prepared, *, batch_tile=512):
    """x: (batch, obs_dim) f32/bf16.  prepared: precompose_and_pad_params(...).
    Returns (batch, acs_dim) f32 Q-values."""
    batch, obs_dim = x.shape
    n_layers = len(prepared)
    acs_dim = prepared[-1]["out_features"]
    out_pad = prepared[-1]["w"].shape[1]
    assert prepared[0]["w"].shape[0] == obs_dim

    # ---- batch (M) tiling: big tiles feed the 256-wide MXUs on v6e/v7x ----
    tm = min(_round_up(batch, _SUBLANE), _round_up(batch_tile, _SUBLANE))
    bpad = _round_up(batch, tm)
    n_tiles = bpad // tm

    # x at its true feature width (no K padding), bf16 (halves input reads).
    xp = x.astype(jnp.bfloat16)
    if bpad != batch:
        xp = jnp.pad(xp, ((0, bpad - batch), (0, 0)))

    flat_inputs = [xp]
    for layer in prepared:
        flat_inputs.append(layer["w"])
        flat_inputs.append(layer["b"])

    def _param_spec(shape, single_buffer):
        # Constant block index -> VMEM-resident across grid steps (no re-DMA);
        # Buffered(1) drops the useless second pipeline buffer.
        if single_buffer:
            return pl.BlockSpec(shape, lambda i: (0, 0),
                                pipeline_mode=pl.Buffered(1))
        return pl.BlockSpec(shape, lambda i: (0, 0))

    def _run(single_buffer):
        in_specs = [pl.BlockSpec((tm, obs_dim), lambda i: (i, 0))]
        for layer in prepared:
            in_specs.append(_param_spec(layer["w"].shape, single_buffer))
            in_specs.append(_param_spec(layer["b"].shape, single_buffer))
        return pl.pallas_call(
            _make_qmlp_kernel(n_layers),
            out_shape=jax.ShapeDtypeStruct((bpad, out_pad), jnp.float32),
            grid=(n_tiles,),
            in_specs=in_specs,
            out_specs=pl.BlockSpec((tm, out_pad), lambda i: (i, 0)),
            compiler_params=pltpu.CompilerParams(
                # independent batch tiles -> shardable across v7x's 2 TCs
                dimension_semantics=("parallel",),
                vmem_limit_bytes=_vmem_limit_bytes(),
            ),
        )(*flat_inputs)

    single = hasattr(pl, "Buffered")
    try:
        y_pad = _run(single)
    except Exception:
        if not single:
            raise
        # TODO(synk): this jax version rejected pl.Buffered(1) single
        # buffering for the resident params; fall back to default buffering.
        y_pad = _run(False)

    # Lane-dense padded output; slice back to the true Q-value width.  In a
    # larger pipeline, prefer consuming y_pad directly (fold the slice into
    # the consumer) to avoid the extra HBM pass this slice implies.
    return y_pad[:batch, :acs_dim]


# ------------------------- deterministic param init ------------------------
def _scale_noise(key, n):
    e = jax.random.normal(key, (n,), dtype=jnp.float32)
    return jnp.sign(e) * jnp.sqrt(jnp.abs(e))


def init_noisy_linear(key, in_features, out_features, std_init=0.5):
    """Matches standard NoisyLinear (factorized Gaussian) init,
    but weights are stored transposed as (in, out)."""
    k_wmu, k_bmu, k_ein, k_eout = jax.random.split(key, 4)
    mu_range = 1.0 / math.sqrt(in_features)

    w_mu = jax.random.uniform(k_wmu, (in_features, out_features),
                              minval=-mu_range, maxval=mu_range,
                              dtype=jnp.float32)
    w_sigma = jnp.full((in_features, out_features),
                       std_init / math.sqrt(in_features), dtype=jnp.float32)
    b_mu = jax.random.uniform(k_bmu, (1, out_features),
                              minval=-mu_range, maxval=mu_range,
                              dtype=jnp.float32)
    b_sigma = jnp.full((1, out_features),
                       std_init / math.sqrt(out_features), dtype=jnp.float32)

    eps_in = _scale_noise(k_ein, in_features)        # (in,)
    eps_out = _scale_noise(k_eout, out_features)     # (out,)
    w_eps = jnp.outer(eps_in, eps_out)               # (in, out) == outer(out,in).T
    b_eps = eps_out.reshape(1, out_features)

    return dict(w_mu=w_mu, w_sigma=w_sigma, w_eps=w_eps,
                b_mu=b_mu, b_sigma=b_sigma, b_eps=b_eps)


def init_disc_noisy_qmlp(key, obs_dim, acs_dim, nlayers, nunits, std_init=0.5):
    params = []
    in_size = obs_dim
    keys = jax.random.split(key, nlayers + 1)
    for i in range(nlayers):
        params.append(init_noisy_linear(keys[i], in_size, nunits, std_init))
        in_size = nunits
    params.append(init_noisy_linear(keys[nlayers], in_size, acs_dim, std_init))
    return params


# ------------------------------- reference ---------------------------------
def reference_forward(x, params):
    h = x.astype(jnp.float32)
    n = len(params)
    for i, p in enumerate(params):
        w = p["w_mu"] + p["w_sigma"] * p["w_eps"]
        b = p["b_mu"] + p["b_sigma"] * p["b_eps"]
        h = h @ w + b
        if i < n - 1:
            h = jnp.maximum(h, 0.0)
    return h


# --------------------------------- main -------------------------------------
if __name__ == "__main__":
    obs_dim, acs_dim = 16, 4
    nlayers, nunits = 2, 32
    batch = 8

    key = jax.random.PRNGKey(0)
    k_params, k_x = jax.random.split(key)

    params = init_disc_noisy_qmlp(k_params, obs_dim, acs_dim, nlayers, nunits,
                                  std_init=0.5)
    x = jax.random.normal(k_x, (batch, obs_dim), dtype=jnp.float32)

    # One-time parameter preparation (per noise draw / parameter update).
    prepared = precompose_and_pad_params(params)

    y = disc_noisy_qmlp_forward(x, prepared)
    y = jax.block_until_ready(y)

    y_ref = reference_forward(x, params)
    assert y.shape == (batch, acs_dim), y.shape
    # bf16 MXU inputs on hidden layers (f32 accumulation, f32 output layer)
    # -> relaxed tolerance vs the f32 reference.
    max_err = float(jnp.max(jnp.abs(y - y_ref)))
    assert jnp.allclose(y, y_ref, atol=2e-2, rtol=2e-2), f"max err = {max_err}"

    print("KERNEL_OK")
</pallas_src>

<mosaic_0001>
module attributes {stable_mosaic.version = 11 : i64} {
  func.func @kernel(%arg0: i32, %arg1: memref<8x16xbf16, #tpu.memory_space<vmem>>, %arg2: memref<16x128xbf16, #tpu.memory_space<vmem>>, %arg3: memref<1x128xf32, #tpu.memory_space<vmem>>, %arg4: memref<128x128xbf16, #tpu.memory_space<vmem>>, %arg5: memref<1x128xf32, #tpu.memory_space<vmem>>, %arg6: memref<128x128xf32, #tpu.memory_space<vmem>>, %arg7: memref<1x128xf32, #tpu.memory_space<vmem>>, %arg8: memref<8x128xf32, #tpu.memory_space<vmem>>) attributes {dimension_semantics = [#tpu.dimension_semantics<parallel>], iteration_bounds = array<i64: 1>, scalar_prefetch = 0 : i64, scratch_operands = 0 : i64, tpu.core_type = #tpu.core_type<tc>, window_params = [{transform_indices = @transform_0, window_bounds = array<i64: 8, 16>}, {pipeline_mode = #tpu.pipeline_mode<synchronous>, transform_indices = @transform_1, window_bounds = array<i64: 16, 128>}, {pipeline_mode = #tpu.pipeline_mode<synchronous>, transform_indices = @transform_2, window_bounds = array<i64: 1, 128>}, {pipeline_mode = #tpu.pipeline_mode<synchronous>, transform_indices = @transform_3, window_bounds = array<i64: 128, 128>}, {pipeline_mode = #tpu.pipeline_mode<synchronous>, transform_indices = @transform_4, window_bounds = array<i64: 1, 128>}, {pipeline_mode = #tpu.pipeline_mode<synchronous>, transform_indices = @transform_5, window_bounds = array<i64: 128, 128>}, {pipeline_mode = #tpu.pipeline_mode<synchronous>, transform_indices = @transform_6, window_bounds = array<i64: 1, 128>}, {transform_indices = @transform_7, window_bounds = array<i64: 8, 128>}]} {
    %c0 = arith.constant 0 : index
    %c0_0 = arith.constant 0 : index
    %0 = vector.load %arg1[%c0, %c0_0] : memref<8x16xbf16, #tpu.memory_space<vmem>>, vector<8x16xbf16>
    %c0_1 = arith.constant 0 : index
    %c0_2 = arith.constant 0 : index
    %1 = vector.load %arg2[%c0_1, %c0_2] : memref<16x128xbf16, #tpu.memory_space<vmem>>, vector<16x128xbf16>
    %cst = arith.constant dense<0.000000e+00> : vector<8x128xf32>
    %2 = tpu.matmul %0, %1, %cst {dimension_numbers = #tpu.dot_dimension_numbers<[1], [0], [0], [1], [0, 0, 1, 1], [], []>} : vector<8x16xbf16>, vector<16x128xbf16>, vector<8x128xf32> -> vector<8x128xf32>
    %c0_3 = arith.constant 0 : index
    %c0_4 = arith.constant 0 : index
    %3 = vector.load %arg3[%c0_3, %c0_4] : memref<1x128xf32, #tpu.memory_space<vmem>>, vector<1x128xf32>
    %4 = vector.broadcast %3 : vector<1x128xf32> to vector<8x128xf32>
    %5 = arith.addf %2, %4 : vector<8x128xf32>
    %cst_5 = arith.constant 0.000000e+00 : f32
    %6 = vector.broadcast %cst_5 : f32 to vector<8x128xf32>
    %7 = arith.maximumf %5, %6 : vector<8x128xf32>
    %c0_6 = arith.constant 0 : index
    %c0_7 = arith.constant 0 : index
    %8 = vector.load %arg4[%c0_6, %c0_7] : memref<128x128xbf16, #tpu.memory_space<vmem>>, vector<128x128xbf16>
    %9 = arith.truncf %7 : vector<8x128xf32> to vector<8x128xbf16>
    %cst_8 = arith.constant dense<0.000000e+00> : vector<8x128xf32>
    %10 = tpu.matmul %9, %8, %cst_8 {dimension_numbers = #tpu.dot_dimension_numbers<[1], [0], [0], [1], [0, 0, 1, 1], [], []>} : vector<8x128xbf16>, vector<128x128xbf16>, vector<8x128xf32> -> vector<8x128xf32>
    %c0_9 = arith.constant 0 : index
    %c0_10 = arith.constant 0 : index
    %11 = vector.load %arg5[%c0_9, %c0_10] : memref<1x128xf32, #tpu.memory_space<vmem>>, vector<1x128xf32>
    %12 = vector.broadcast %11 : vector<1x128xf32> to vector<8x128xf32>
    %13 = arith.addf %10, %12 : vector<8x128xf32>
    %cst_11 = arith.constant 0.000000e+00 : f32
    %14 = vector.broadcast %cst_11 : f32 to vector<8x128xf32>
    %15 = arith.maximumf %13, %14 : vector<8x128xf32>
    %c0_12 = arith.constant 0 : index
    %c0_13 = arith.constant 0 : index
    %16 = vector.load %arg6[%c0_12, %c0_13] : memref<128x128xf32, #tpu.memory_space<vmem>>, vector<128x128xf32>
    %cst_14 = arith.constant dense<0.000000e+00> : vector<8x128xf32>
    %17 = tpu.matmul %15, %16, %cst_14 {dimension_numbers = #tpu.dot_dimension_numbers<[1], [0], [0], [1], [0, 0, 1, 1], [], []>} : vector<8x128xf32>, vector<128x128xf32>, vector<8x128xf32> -> vector<8x128xf32>
    %c0_15 = arith.constant 0 : index
    %c0_16 = arith.constant 0 : index
    %18 = vector.load %arg7[%c0_15, %c0_16] : memref<1x128xf32, #tpu.memory_space<vmem>>, vector<1x128xf32>
    %19 = vector.broadcast %18 : vector<1x128xf32> to vector<8x128xf32>
    %20 = arith.addf %17, %19 : vector<8x128xf32>
    %c0_17 = arith.constant 0 : index
    %c0_18 = arith.constant 0 : index
    %21 = vector.load %arg8[%c0_17, %c0_18] : memref<8x128xf32, #tpu.memory_space<vmem>>, vector<8x128xf32>
    tpu.vector_store %arg8[%c0_17, %c0_18], %20 {strides = array<i32>} : memref<8x128xf32, #tpu.memory_space<vmem>>, vector<8x128xf32>,
    return
  }
  func.func @transform_0(%arg0: i32) -> (i32, i32) {
    %c0_i32 = arith.constant 0 : i32
    %c0_i32_0 = arith.constant 0 : i32
    return %arg0, %c0_i32 : i32, i32
  }
  func.func @transform_1(%arg0: i32) -> (i32, i32) {
    %c0_i32 = arith.constant 0 : i32
    %c0_i32_0 = arith.constant 0 : i32
    %c0_i32_1 = arith.constant 0 : i32
    return %c0_i32, %c0_i32_0 : i32, i32
  }
  func.func @transform_2(%arg0: i32) -> (i32, i32) {
    %c0_i32 = arith.constant 0 : i32
    %c0_i32_0 = arith.constant 0 : i32
    %c0_i32_1 = arith.constant 0 : i32
    return %c0_i32, %c0_i32_0 : i32, i32
  }
  func.func @transform_3(%arg0: i32) -> (i32, i32) {
    %c0_i32 = arith.constant 0 : i32
    %c0_i32_0 = arith.constant 0 : i32
    %c0_i32_1 = arith.constant 0 : i32
    return %c0_i32, %c0_i32_0 : i32, i32
  }
  func.func @transform_4(%arg0: i32) -> (i32, i32) {
    %c0_i32 = arith.constant 0 : i32
    %c0_i32_0 = arith.constant 0 : i32
    %c0_i32_1 = arith.constant 0 : i32
    return %c0_i32, %c0_i32_0 : i32, i32
  }
  func.func @transform_5(%arg0: i32) -> (i32, i32) {
    %c0_i32 = arith.constant 0 : i32
    %c0_i32_0 = arith.constant 0 : i32
    %c0_i32_1 = arith.constant 0 : i32
    return %c0_i32, %c0_i32_0 : i32, i32
  }
  func.func @transform_6(%arg0: i32) -> (i32, i32) {
    %c0_i32 = arith.constant 0 : i32
    %c0_i32_0 = arith.constant 0 : i32
    %c0_i32_1 = arith.constant 0 : i32
    return %c0_i32, %c0_i32_0 : i32, i32
  }
  func.func @transform_7(%arg0: i32) -> (i32, i32) {
    %c0_i32 = arith.constant 0 : i32
    %c0_i32_0 = arith.constant 0 : i32
    return %arg0, %c0_i32 : i32, i32
  }
}

module attributes {stable_mosaic.version = 11 : i64} {
  func.func @kernel(%arg0: i32, %arg1: memref<8x16xbf16, #tpu.memory_space<vmem>>, %arg2: memref<16x128xbf16, #tpu.memory_space<vmem>>, %arg3: memref<1x128xf32, #tpu.memory_space<vmem>>, %arg4: memref<128x128xbf16, #tpu.memory_space<vmem>>, %arg5: memref<1x128xf32, #tpu.memory_space<vmem>>, %arg6: memref<128x128xf32, #tpu.memory_space<vmem>>, %arg7: memref<1x128xf32, #tpu.memory_space<vmem>>, %arg8: memref<8x128xf32, #tpu.memory_space<vmem>>) attributes {dimension_semantics = [#tpu.dimension_semantics<parallel>], iteration_bounds = array<i64: 1>, scalar_prefetch = 0 : i64, scratch_operands = 0 : i64, tpu.core_type = #tpu.core_type<tc>, window_params = [{transform_indices = @transform_0, window_bounds = array<i64: 8, 16>}, {pipeline_mode = #tpu.pipeline_mode<synchronous>, transform_indices = @transform_1, window_bounds = array<i64: 16, 128>}, {pipeline_mode = #tpu.pipeline_mode<synchronous>, transform_indices = @transform_2, window_bounds = array<i64: 1, 128>}, {pipeline_mode = #tpu.pipeline_mode<synchronous>, transform_indices = @transform_3, window_bounds = array<i64: 128, 128>}, {pipeline_mode = #tpu.pipeline_mode<synchronous>, transform_indices = @transform_4, window_bounds = array<i64: 1, 128>}, {pipeline_mode = #tpu.pipeline_mode<synchronous>, transform_indices = @transform_5, window_bounds = array<i64: 128, 128>}, {pipeline_mode = #tpu.pipeline_mode<synchronous>, transform_indices = @transform_6, window_bounds = array<i64: 1, 128>}, {transform_indices = @transform_7, window_bounds = array<i64: 8, 128>}]} {
    %c0 = arith.constant 0 : index
    %c0_0 = arith.constant 0 : index
    %0 = vector.load %arg1[%c0, %c0_0] : memref<8x16xbf16, #tpu.memory_space<vmem>>, vector<8x16xbf16>
    %c0_1 = arith.constant 0 : index
    %c0_2 = arith.constant 0 : index
    %1 = vector.load %arg2[%c0_1, %c0_2] : memref<16x128xbf16, #tpu.memory_space<vmem>>, vector<16x128xbf16>
    %cst = arith.constant dense<0.000000e+00> : vector<8x128xf32>
    %2 = tpu.matmul %0, %1, %cst {dimension_numbers = #tpu.dot_dimension_numbers<[1], [0], [0], [1], [0, 0, 1, 1], [], []>} : vector<8x16xbf16>, vector<16x128xbf16>, vector<8x128xf32> -> vector<8x128xf32>
    %c0_3 = arith.constant 0 : index
    %c0_4 = arith.constant 0 : index
    %3 = vector.load %arg3[%c0_3, %c0_4] : memref<1x128xf32, #tpu.memory_space<vmem>>, vector<1x128xf32>
    %4 = vector.broadcast %3 : vector<1x128xf32> to vector<8x128xf32>
    %5 = arith.addf %2, %4 : vector<8x128xf32>
    %cst_5 = arith.constant 0.000000e+00 : f32
    %6 = vector.broadcast %cst_5 : f32 to vector<8x128xf32>
    %7 = arith.maximumf %5, %6 : vector<8x128xf32>
    %c0_6 = arith.constant 0 : index
    %c0_7 = arith.constant 0 : index
    %8 = vector.load %arg4[%c0_6, %c0_7] : memref<128x128xbf16, #tpu.memory_space<vmem>>, vector<128x128xbf16>
    %9 = arith.truncf %7 : vector<8x128xf32> to vector<8x128xbf16>
    %cst_8 = arith.constant dense<0.000000e+00> : vector<8x128xf32>
    %10 = tpu.matmul %9, %8, %cst_8 {dimension_numbers = #tpu.dot_dimension_numbers<[1], [0], [0], [1], [0, 0, 1, 1], [], []>} : vector<8x128xbf16>, vector<128x128xbf16>, vector<8x128xf32> -> vector<8x128xf32>
    %c0_9 = arith.constant 0 : index
    %c0_10 = arith.constant 0 : index
    %11 = vector.load %arg5[%c0_9, %c0_10] : memref<1x128xf32, #tpu.memory_space<vmem>>, vector<1x128xf32>
    %12 = vector.broadcast %11 : vector<1x128xf32> to vector<8x128xf32>
    %13 = arith.addf %10, %12 : vector<8x128xf32>
    %cst_11 = arith.constant 0.000000e+00 : f32
    %14 = vector.broadcast %cst_11 : f32 to vector<8x128xf32>
    %15 = arith.maximumf %13, %14 : vector<8x128xf32>
    %c0_12 = arith.constant 0 : index
    %c0_13 = arith.constant 0 : index
    %16 = vector.load %arg6[%c0_12, %c0_13] : memref<128x128xf32, #tpu.memory_space<vmem>>, vector<128x128xf32>
    %cst_14 = arith.constant dense<0.000000e+00> : vector<8x128xf32>
    %17 = tpu.matmul %15, %16, %cst_14 {dimension_numbers = #tpu.dot_dimension_numbers<[1], [0], [0], [1], [0, 0, 1, 1], [], []>} : vector<8x128xf32>, vector<128x128xf32>, vector<8x128xf32> -> vector<8x128xf32>
    %c0_15 = arith.constant 0 : index
    %c0_16 = arith.constant 0 : index
    %18 = vector.load %arg7[%c0_15, %c0_16] : memref<1x128xf32, #tpu.memory_space<vmem>>, vector<1x128xf32>
    %19 = vector.broadcast %18 : vector<1x128xf32> to vector<8x128xf32>
    %20 = arith.addf %17, %19 : vector<8x128xf32>
    %c0_17 = arith.constant 0 : index
    %c0_18 = arith.constant 0 : index
    %21 = vector.load %arg8[%c0_17, %c0_18] : memref<8x128xf32, #tpu.memory_space<vmem>>, vector<8x128xf32>
    tpu.vector_store %arg8[%c0_17, %c0_18], %20 {strides = array<i32>} : memref<8x128xf32, #tpu.memory_space<vmem>>, vector<8x128xf32>,
    return
  }
  func.func @transform_0(%arg0: i32) -> (i32, i32) {
    %c0_i32 = arith.constant 0 : i32
    %c0_i32_0 = arith.constant 0 : i32
    return %arg0, %c0_i32 : i32, i32
  }
  func.func @transform_1(%arg0: i32) -> (i32, i32) {
    %c0_i32 = arith.constant 0 : i32
    %c0_i32_0 = arith.constant 0 : i32
    %c0_i32_1 = arith.constant 0 : i32
    return %c0_i32, %c0_i32_0 : i32, i32
  }
  func.func @transform_2(%arg0: i32) -> (i32, i32) {
    %c0_i32 = arith.constant 0 : i32
    %c0_i32_0 = arith.constant 0 : i32
    %c0_i32_1 = arith.constant 0 : i32
    return %c0_i32, %c0_i32_0 : i32, i32
  }
  func.func @transform_3(%arg0: i32) -> (i32, i32) {
    %c0_i32 = arith.constant 0 : i32
    %c0_i32_0 = arith.constant 0 : i32
    %c0_i32_1 = arith.constant 0 : i32
    return %c0_i32, %c0_i32_0 : i32, i32
  }
  func.func @transform_4(%arg0: i32) -> (i32, i32) {
    %c0_i32 = arith.constant 0 : i32
    %c0_i32_0 = arith.constant 0 : i32
    %c0_i32_1 = arith.constant 0 : i32
    return %c0_i32, %c0_i32_0 : i32, i32
  }
  func.func @transform_5(%arg0: i32) -> (i32, i32) {
    %c0_i32 = arith.constant 0 : i32
    %c0_i32_0 = arith.constant 0 : i32
    %c0_i32_1 = arith.constant 0 : i32
    return %c0_i32, %c0_i32_0 : i32, i32
  }
  func.func @transform_6(%arg0: i32) -> (i32, i32) {
    %c0_i32 = arith.constant 0 : i32
    %c0_i32_0 = arith.constant 0 : i32
    %c0_i32_1 = arith.constant 0 : i32
    return %c0_i32, %c0_i32_0 : i32, i32
  }
  func.func @transform_7(%arg0: i32) -> (i32, i32) {
    %c0_i32 = arith.constant 0 : i32
    %c0_i32_0 = arith.constant 0 : i32
    return %arg0, %c0_i32 : i32, i32
  }
}

</mosaic_0001>

<llo_original>
// kernel: tpu_custom_call.1
$region0: #{tpu_custom_call.1}
  #allocation0 [shape = 'u32[]', space=smem, size = 0x4, offset = 0x4, fixed_abs, tag = 'smem constant byte address 0x4 - core index']
  #allocation1 [shape = 'u32[144,128]{1,0:T(1,128)}', space=vmem, size = 0x12000, scoped, tag = 'internal scratch']
  %s0 = inlined_call_operand.hbm [shape: bf16[8,16], index: 0, kind: input, shape index: {}]
  %s1 = inlined_call_operand.hbm [shape: bf16[16,128], index: 1, kind: input, shape index: {}]
  %s2 = inlined_call_operand.vmem [shape: f32[1,128], index: 2, kind: input, shape index: {}]
  %s3 = inlined_call_operand.hbm [shape: bf16[128,128], index: 3, kind: input, shape index: {}]
  %s4 = inlined_call_operand.vmem [shape: f32[1,128], index: 4, kind: input, shape index: {}]
  %s5 = inlined_call_operand.hbm [shape: f32[128,128], index: 5, kind: input, shape index: {}]
  %s6 = inlined_call_operand.vmem [shape: f32[1,128], index: 6, kind: input, shape index: {}]
  %s7 = inlined_call_operand.hbm [shape: f32[8,128], index: 7, kind: output, shape index: {}]
  %s8 = sld [smem:[#allocation0]]
  $region54: #{tpu_custom_call.1} parent=0
    _
  %s10 = ssub.s32 1, %s8
  %s11 = scalar_select 0, %s10, %s8
  $region1: #{tpu_custom_call.1} parent=0
    #allocation2 [shape = 'u8[2048]{0}', space=vmem, size = 0x800, scoped, tag = 'input window, operand 0, single buffered']
    #allocation3 [shape = 's32[1]{0}', space=sflag, size = 0x4, scoped, tag = 'scoped memory for tpu_custom_call.1']
    #allocation4 [shape = 's32[1]{0}', space=sflag, size = 0x4, scoped, tag = 'scoped memory for tpu_custom_call.1']
    #allocation5 [shape = 'u8[4096]{0}', space=vmem, size = 0x1000, scoped, tag = 'input window, operand 1, single buffered']
    #allocation6 [shape = 's32[1]{0}', space=sflag, size = 0x4, scoped, tag = 'scoped memory for tpu_custom_call.1']
    #allocation7 [shape = 'u8[32768]{0}', space=vmem, size = 0x8000, scoped, tag = 'input window, operand 3, single buffered']
    #allocation8 [shape = 'u8[65536]{0}', space=vmem, size = 0x10000, scoped, tag = 'input window, operand 5, single buffered']
    #allocation9 [shape = 's32[1]{0}', space=sflag, size = 0x4, scoped, tag = 'scoped memory for tpu_custom_call.1']
    #allocation10 [shape = 'u8[4096]{0}', space=vmem, size = 0x1000, scoped, tag = 'output window, operand 0, single buffered']
    %12 = vsyncpa [#allocation3], 0
    %13 = vsyncpa [#allocation6], 0
    %14 = vsyncpa [#allocation9], 0
    %15 = vsyncpa [#allocation4], 0
    // Predicated region
    $region2: #{tpu_custom_call.1} parent=1 // pred_check
      _
    $region3: #{tpu_custom_call.1} parent=1 // pred_check_branch
      %17 = sbr.rel (0) target = $region5
    $region4: #{tpu_custom_call.1} parent=1 // pred_region
      %s19 = ssub.s32 64, 64
      %20 = vsyncadd [#allocation3], %s19
      %s22 = sshll.u32 [#allocation2], 4
      %s23 = int_to_ptr.vmem [resolvable:$true] %s22
      %25 = dma.hbm_to_vmem [thread:$0]  %s0, 64, %s23, [#allocation3]
    $region5: #{tpu_custom_call.1} parent=1 // pred_fallthru
      _
    // Predicated region
    $region6: #{tpu_custom_call.1} parent=1 // pred_check
      _
    $region7: #{tpu_custom_call.1} parent=1 // pred_check_branch
      %27 = sbr.rel (0) target = $region9
    $region8: #{tpu_custom_call.1} parent=1 // pred_region
      %s29 = ssub.s32 128, 128
      %30 = vsyncadd [#allocation6], %s29
      %s31 = sshll.u32 [#allocation5], 4
      %s32 = int_to_ptr.vmem [resolvable:$true] %s31
      %37 = dma.hbm_to_vmem [thread:$0]  %s1, 128, %s32, [#allocation6], 64, 64, 4
    $region9: #{tpu_custom_call.1} parent=1 // pred_fallthru
      _
    // Predicated region
    $region10: #{tpu_custom_call.1} parent=1 // pred_check
      _
    $region11: #{tpu_custom_call.1} parent=1 // pred_check_branch
      %39 = sbr.rel (0) target = $region13
    $region12: #{tpu_custom_call.1} parent=1 // pred_region
      _
    $region13: #{tpu_custom_call.1} parent=1 // pred_fallthru
      _
    // Predicated region
    $region14: #{tpu_custom_call.1} parent=1 // pred_check
      _
    $region15: #{tpu_custom_call.1} parent=1 // pred_check_branch
      %41 = sbr.rel (0) target = $region17
    $region16: #{tpu_custom_call.1} parent=1 // pred_region
      %s43 = ssub.s32 1024, 1024
      %44 = vsyncadd [#allocation6], %s43
      %s45 = sshll.u32 [#allocation7], 4
      %s46 = int_to_ptr.vmem [resolvable:$true] %s45
      %51 = dma.hbm_to_vmem [thread:$0]  %s3, 1024, %s46, [#allocation6], 64, 64, 4
    $region17: #{tpu_custom_call.1} parent=1 // pred_fallthru
      _
    // Predicated region
    $region18: #{tpu_custom_call.1} parent=1 // pred_check
      _
    $region19: #{tpu_custom_call.1} parent=1 // pred_check_branch
      %53 = sbr.rel (0) target = $region21
    $region20: #{tpu_custom_call.1} parent=1 // pred_region
      _
    $region21: #{tpu_custom_call.1} parent=1 // pred_fallthru
      _
    // Predicated region
    $region22: #{tpu_custom_call.1} parent=1 // pred_check
      _
    $region23: #{tpu_custom_call.1} parent=1 // pred_check_branch
      %55 = sbr.rel (0) target = $region25
    $region24: #{tpu_custom_call.1} parent=1 // pred_region
      %s57 = ssub.s32 2048, 2048
      %58 = vsyncadd [#allocation9], %s57
      %s59 = sshll.u32 [#allocation8], 4
      %s60 = int_to_ptr.vmem [resolvable:$true] %s59
      %65 = dma.hbm_to_vmem [thread:$0]  %s5, 2048, %s60, [#allocation9], 128, 128, 8
    $region25: #{tpu_custom_call.1} parent=1 // pred_fallthru
      _
    // Predicated region
    $region26: #{tpu_custom_call.1} parent=1 // pred_check
      _
    $region27: #{tpu_custom_call.1} parent=1 // pred_check_branch
      %67 = sbr.rel (0) target = $region29
    $region28: #{tpu_custom_call.1} parent=1 // pred_region
      _
    $region29: #{tpu_custom_call.1} parent=1 // pred_fallthru
      _
    // Predicated region
    $region30: #{tpu_custom_call.1} parent=1 // pred_check
      _
    $region31: #{tpu_custom_call.1} parent=1 // pred_check_branch
      %69 = sbr.rel (0) target = $region33
    $region32: #{tpu_custom_call.1} parent=1 // pred_region
      %70 = dma.done [#allocation3], 64
    $region33: #{tpu_custom_call.1} parent=1 // pred_fallthru
      _
    // Predicated region
    $region34: #{tpu_custom_call.1} parent=1 // pred_check
      _
    $region35: #{tpu_custom_call.1} parent=1 // pred_check_branch
      %72 = sbr.rel (0) target = $region37
    $region36: #{tpu_custom_call.1} parent=1 // pred_region
      %73 = dma.done [#allocation6], 128
    $region37: #{tpu_custom_call.1} parent=1 // pred_fallthru
      _
    // Predicated region
    $region38: #{tpu_custom_call.1} parent=1 // pred_check
      _
    $region39: #{tpu_custom_call.1} parent=1 // pred_check_branch
      %75 = sbr.rel (0) target = $region41
    $region40: #{tpu_custom_call.1} parent=1 // pred_region
      %76 = dma.done [#allocation6], 1024
    $region41: #{tpu_custom_call.1} parent=1 // pred_fallthru
      _
    // Predicated region
    $region42: #{tpu_custom_call.1} parent=1 // pred_check
      _
    $region43: #{tpu_custom_call.1} parent=1 // pred_check_branch
      %78 = sbr.rel (0) target = $region45
    $region44: #{tpu_custom_call.1} parent=1 // pred_region
      %79 = dma.done [#allocation9], 2048
    $region45: #{tpu_custom_call.1} parent=1 // pred_fallthru
      _
    %v81 = vld [vmem:[#allocation2] sm:$0xf]
    %v82 = vld [vmem:[#allocation5] sm:$0xf]
    %v83 = vld [vmem:[#allocation5 + $0x4] sm:$0xf]
    %v84 = vld [vmem:[%s2] sm:$0x1]
    %v86 = vlaneseq
    %v87 = vshrl.u32 %v86, 7
    %v88 = vsub.s32 0, %v87
    %v89 = vrot.slane %v84, %v88
    %v93 = vunpack.c.l.b16 %v82
    %v94 = vunpack.c.l.b16 %v83
    %v95 = vpack.c.b16 %v94, %v93
    %vm97 = vcmask 130048
    %v99 = vsel %vm97, %v81, 0
    %101 = vmatprep.subr.bf16.mxu0 0
    %102 = vmatpush1.bf16.msra.mxu0 %v95
    %103 = vmatprep.subr.bf16.mxu0 0
    %104 = vmatpush1.bf16.msra.mxu0 0
    %105 = vmatprep.subr.bf16.mxu0 0
    %106 = vmatpush1.bf16.msra.mxu0 0
    %107 = vmatprep.subr.bf16.mxu0 0
    %108 = vmatpush1.bf16.msra.mxu0 0
    %109 = vmatprep.subr.bf16.mxu0 0
    %110 = vmatpush1.bf16.msra.mxu0 0
    %111 = vmatprep.subr.bf16.mxu0 0
    %112 = vmatpush1.bf16.msra.mxu0 0
    %113 = vmatprep.subr.bf16.mxu0 0
    %114 = vmatpush1.bf16.msra.mxu0 0
    %115 = vmatprep.subr.bf16.mxu0 0
    %116 = vmatpush1.bf16.msra.mxu0 0
    %117 = vmatprep.subr.bf16.mxu0 0
    %118 = vmatpush1.bf16.msra.mxu0 0
    %119 = vmatprep.subr.bf16.mxu0 0
    %120 = vmatpush1.bf16.msra.mxu0 0
    %121 = vmatprep.subr.bf16.mxu0 0
    %122 = vmatpush1.bf16.msra.mxu0 0
    %123 = vmatprep.subr.bf16.mxu0 0
    %124 = vmatpush1.bf16.msra.mxu0 0
    %125 = vmatprep.subr.bf16.mxu0 0
    %126 = vmatpush1.bf16.msra.mxu0 0
    %127 = vmatprep.subr.bf16.mxu0 0
    %128 = vmatpush1.bf16.msra.mxu0 0
    %129 = vmatprep.subr.bf16.mxu0 0
    %130 = vmatpush1.bf16.msra.mxu0 0
    %131 = vmatprep.subr.bf16.mxu0 0
    %132 = vmatpush1.bf16.msra.mxu0 0
    %133 = vmatprep.mubr.bf16.mxu0 0
    %134 = vmatmul.mubr.bf16.gmra.mrb[0].mxu0 %v99
    %v135 = vpop.f32.mrb[0].mxu0
    %v136 = vadd.f32 %v89, %v135
    %v137 = vpop.f32.mrb[0].mxu0
    %v138 = vpop.f32.mrb[0].mxu0
    %v139 = vpop.f32.mrb[0].mxu0
    %140 = vdwg.mxu0
    %v141 = vmax.f32 %v136, 0.0
    %v142 = vld [vmem:[#allocation7] sm:$0xf]
    %v143 = vld [vmem:[#allocation7 + $0x4] sm:$0xf]
    %v144 = vld [vmem:[#allocation7 + $0x8] sm:$0xf]
    %v145 = vld [vmem:[#allocation7 + $0xc] sm:$0xf]
    %v146 = vld [vmem:[#allocation7 + $0x10] sm:$0xf]
    %v147 = vld [vmem:[#allocation7 + $0x14] sm:$0xf]
    %v148 = vld [vmem:[#allocation7 + $0x18] sm:$0xf]
    %v149 = vld [vmem:[#allocation7 + $0x1c] sm:$0xf]
    %v150 = vld [vmem:[#allocation7 + $0x20] sm:$0xf]
    %v151 = vld [vmem:[#allocation7 + $0x24] sm:$0xf]
    %v152 = vld [vmem:[#allocation7 + $0x28] sm:$0xf]
    %v153 = vld [vmem:[#allocation7 + $0x2c] sm:$0xf]
    %v154 = vld [vmem:[#allocation7 + $0x30] sm:$0xf]
    %v155 = vld [vmem:[#allocation7 + $0x34] sm:$0xf]
    %v156 = vld [vmem:[#allocation7 + $0x38] sm:$0xf]
    %v157 = vld [vmem:[#allocation7 + $0x3c] sm:$0xf]
    %v158 = vpack.c.bf16 %v141, %v141
    %v159 = vld [vmem:[%s4] sm:$0x1]
    %v161 = vlaneseq
    %v162 = vshrl.u32 %v161, 7
    %v163 = vsub.s32 0, %v162
    %v164 = vrot.slane %v159, %v163
    %v182 = vunpack.c.l.b16 %v142
    %v183 = vunpack.c.l.b16 %v143
    %v184 = vunpack.c.l.b16 %v144
    %v185 = vunpack.c.l.b16 %v145
    %v186 = vunpack.c.l.b16 %v146
    %v187 = vunpack.c.l.b16 %v147
    %v188 = vunpack.c.l.b16 %v148
    %v189 = vunpack.c.l.b16 %v149
    %v190 = vunpack.c.l.b16 %v150
    %v191 = vunpack.c.l.b16 %v151
    %v192 = vunpack.c.l.b16 %v152
    %v193 = vunpack.c.l.b16 %v153
    %v194 = vunpack.c.l.b16 %v154
    %v195 = vunpack.c.l.b16 %v155
    %v196 = vunpack.c.l.b16 %v156
    %v197 = vunpack.c.l.b16 %v157
    %v198 = vpack.c.b16 %v183, %v182
    %v199 = vpack.c.b16 %v185, %v184
    %v200 = vpack.c.b16 %v187, %v186
    %v201 = vpack.c.b16 %v189, %v188
    %v202 = vpack.c.b16 %v191, %v190
    %v203 = vpack.c.b16 %v193, %v192
    %v204 = vpack.c.b16 %v195, %v194
    %v205 = vpack.c.b16 %v197, %v196
    %214 = vmatprep.subr.bf16.mxu0 0
    %215 = vmatpush1.bf16.msra.mxu0 %v198
    %216 = vmatprep.subr.bf16.mxu0 0
    %217 = vmatpush1.bf16.msra.mxu0 %v199
    %218 = vmatprep.subr.bf16.mxu0 0
    %219 = vmatpush1.bf16.msra.mxu0 %v200
    %220 = vmatprep.subr.bf16.mxu0 0
    %221 = vmatpush1.bf16.msra.mxu0 %v201
    %222 = vmatprep.subr.bf16.mxu0 0
    %223 = vmatpush1.bf16.msra.mxu0 %v202
    %224 = vmatprep.subr.bf16.mxu0 0
    %225 = vmatpush1.bf16.msra.mxu0 %v203
    %226 = vmatprep.subr.bf16.mxu0 0
    %227 = vmatpush1.bf16.msra.mxu0 %v204
    %228 = vmatprep.subr.bf16.mxu0 0
    %229 = vmatpush1.bf16.msra.mxu0 %v205
    %230 = vmatprep.subr.bf16.mxu0 0
    %231 = vmatpush1.bf16.msra.mxu0 0
    %232 = vmatprep.subr.bf16.mxu0 0
    %233 = vmatpush1.bf16.msra.mxu0 0
    %234 = vmatprep.subr.bf16.mxu0 0
    %235 = vmatpush1.bf16.msra.mxu0 0
    %236 = vmatprep.subr.bf16.mxu0 0
    %237 = vmatpush1.bf16.msra.mxu0 0
    %238 = vmatprep.subr.bf16.mxu0 0
    %239 = vmatpush1.bf16.msra.mxu0 0
    %240 = vmatprep.subr.bf16.mxu0 0
    %241 = vmatpush1.bf16.msra.mxu0 0
    %242 = vmatprep.subr.bf16.mxu0 0
    %243 = vmatpush1.bf16.msra.mxu0 0
    %244 = vmatprep.subr.bf16.mxu0 0
    %245 = vmatpush1.bf16.msra.mxu0 0
    %246 = vmatprep.mubr.bf16.mxu0 0
    %247 = vmatmul.mubr.bf16.gmra.mrb[0].mxu0 %v158
    %v248 = vpop.f32.mrb[0].mxu0
    %v249 = vadd.f32 %v164, %v248
    %v250 = vpop.f32.mrb[0].mxu0
    %v251 = vpop.f32.mrb[0].mxu0
    %v252 = vpop.f32.mrb[0].mxu0
    %253 = vdwg.mxu0
    %v254 = vmax.f32 %v249, 0.0
    %v255 = vld [vmem:[#allocation8] sm:$0xff]
    %v256 = vld [vmem:[#allocation8 + $0x8] sm:$0xff]
    %v257 = vld [vmem:[#allocation8 + $0x10] sm:$0xff]
    %v258 = vld [vmem:[#allocation8 + $0x18] sm:$0xff]
    %v259 = vld [vmem:[#allocation8 + $0x20] sm:$0xff]
    %v260 = vld [vmem:[#allocation8 + $0x28] sm:$0xff]
    %v261 = vld [vmem:[#allocation8 + $0x30] sm:$0xff]
    %v262 = vld [vmem:[#allocation8 + $0x38] sm:$0xff]
    %v263 = vld [vmem:[#allocation8 + $0x40] sm:$0xff]
    %v264 = vld [vmem:[#allocation8 + $0x48] sm:$0xff]
    %v265 = vld [vmem:[#allocation8 + $0x50] sm:$0xff]
    %v266 = vld [vmem:[#allocation8 + $0x58] sm:$0xff]
    %v267 = vld [vmem:[#allocation8 + $0x60] sm:$0xff]
    %v268 = vld [vmem:[#allocation8 + $0x68] sm:$0xff]
    %v269 = vld [vmem:[#allocation8 + $0x70] sm:$0xff]
    %v270 = vld [vmem:[#allocation8 + $0x78] sm:$0xff]
    %v271 = vld [vmem:[%s6] sm:$0x1]
    %v273 = vlaneseq
    %v274 = vshrl.u32 %v273, 7
    %v275 = vsub.s32 0, %v274
    %v276 = vrot.slane %v271, %v275
    %278 = vmatprep.subr.mxu0 0.0
    %279 = vmatpush1.msra.mxu0 %v255
    %280 = vmatprep.subr.mxu0 0.0
    %281 = vmatpush1.msra.mxu0 %v256
    %282 = vmatprep.subr.mxu0 0.0
    %283 = vmatpush1.msra.mxu0 %v257
    %284 = vmatprep.subr.mxu0 0.0
    %285 = vmatpush1.msra.mxu0 %v258
    %286 = vmatprep.subr.mxu0 0.0
    %287 = vmatpush1.msra.mxu0 %v259
    %288 = vmatprep.subr.mxu0 0.0
    %289 = vmatpush1.msra.mxu0 %v260
    %290 = vmatprep.subr.mxu0 0.0
    %291 = vmatpush1.msra.mxu0 %v261
    %292 = vmatprep.subr.mxu0 0.0
    %293 = vmatpush1.msra.mxu0 %v262
    %294 = vmatprep.subr.mxu0 0.0
    %295 = vmatpush1.msra.mxu0 %v263
    %296 = vmatprep.subr.mxu0 0.0
    %297 = vmatpush1.msra.mxu0 %v264
    %298 = vmatprep.subr.mxu0 0.0
    %299 = vmatpush1.msra.mxu0 %v265
    %300 = vmatprep.subr.mxu0 0.0
    %301 = vmatpush1.msra.mxu0 %v266
    %302 = vmatprep.subr.mxu0 0.0
    %303 = vmatpush1.msra.mxu0 %v267
    %304 = vmatprep.subr.mxu0 0.0
    %305 = vmatpush1.msra.mxu0 %v268
    %306 = vmatprep.subr.mxu0 0.0
    %307 = vmatpush1.msra.mxu0 %v269
    %308 = vmatprep.subr.mxu0 0.0
    %309 = vmatpush1.msra.mxu0 %v270
    %310 = vmatprep.subr.mxu0 0.0
    %311 = vmatpush1.msra.mxu0 0.0
    %312 = vmatprep.subr.mxu0 0.0
    %313 = vmatpush1.msra.mxu0 0.0
    %314 = vmatprep.subr.mxu0 0.0
    %315 = vmatpush1.msra.mxu0 0.0
    %316 = vmatprep.subr.mxu0 0.0
    %317 = vmatpush1.msra.mxu0 0.0
    %318 = vmatprep.subr.mxu0 0.0
    %319 = vmatpush1.msra.mxu0 0.0
    %320 = vmatprep.subr.mxu0 0.0
    %321 = vmatpush1.msra.mxu0 0.0
    %322 = vmatprep.subr.mxu0 0.0
    %323 = vmatpush1.msra.mxu0 0.0
    %324 = vmatprep.subr.mxu0 0.0
    %325 = vmatpush1.msra.mxu0 0.0
    %326 = vmatprep.subr.mxu0 0.0
    %327 = vmatpush1.msra.mxu0 0.0
    %328 = vmatprep.subr.mxu0 0.0
    %329 = vmatpush1.msra.mxu0 0.0
    %330 = vmatprep.subr.mxu0 0.0
    %331 = vmatpush1.msra.mxu0 0.0
    %332 = vmatprep.subr.mxu0 0.0
    %333 = vmatpush1.msra.mxu0 0.0
    %334 = vmatprep.subr.mxu0 0.0
    %335 = vmatpush1.msra.mxu0 0.0
    %336 = vmatprep.subr.mxu0 0.0
    %337 = vmatpush1.msra.mxu0 0.0
    %338 = vmatprep.subr.mxu0 0.0
    %339 = vmatpush1.msra.mxu0 0.0
    %340 = vmatprep.subr.mxu0 0.0
    %341 = vmatpush1.msra.mxu0 0.0
    %342 = vmatprep.mubr.f32.mxu0 0.0
    %343 = vmatmul.mubr.f32.gmra.mrb[0].mxu0 %v254
    %v344 = vpop.f32.mrb[0].mxu0
    %v345 = vadd.f32 %v276, %v344
    %v346 = vpop.f32.mrb[0].mxu0
    %347 = vdwg.mxu0
    %348 = vst [vmem:[#allocation10] sm:$0xff] %v345
    // Predicated region
    $region46: #{tpu_custom_call.1} parent=1 // pred_check
      _
    $region47: #{tpu_custom_call.1} parent=1 // pred_check_branch
      %350 = sbr.rel (0) target = $region49
    $region48: #{tpu_custom_call.1} parent=1 // pred_region
      %s352 = ssub.s32 128, 128
      %353 = vsyncadd [#allocation4], %s352
      %s355 = sshll.u32 [#allocation10], 4
      %s356 = int_to_ptr.vmem [resolvable:$true] %s355
      %358 = dma.vmem_to_hbm [thread:$0]  %s356, 128, %s7, [#allocation4]
    $region49: #{tpu_custom_call.1} parent=1 // pred_fallthru
      _
    // Predicated region
    $region50: #{tpu_custom_call.1} parent=1 // pred_check
      _
    $region51: #{tpu_custom_call.1} parent=1 // pred_check_branch
      %360 = sbr.rel (0) target = $region53
    $region52: #{tpu_custom_call.1} parent=1 // pred_region
      %361 = dma.done [#allocation4], 128
    $region53: #{tpu_custom_call.1} parent=1 // pred_fallthru
      _
    %362 = vsyncpa [#allocation3], 1
    %363 = vsyncpa [#allocation6], 1
    %364 = vsyncpa [#allocation9], 1
    %365 = vsyncpa [#allocation4], 1

// kernel: tpu_custom_call.1
$region0: #{tpu_custom_call.1}
  #allocation0 [shape = 'u32[]', space=smem, size = 0x4, offset = 0x4, fixed_abs, tag = 'smem constant byte address 0x4 - core index']
  #allocation1 [shape = 'u32[144,128]{1,0:T(1,128)}', space=vmem, size = 0x12000, scoped, tag = 'internal scratch']
  %s0 = inlined_call_operand.hbm [shape: bf16[8,16], index: 0, kind: input, shape index: {}]
  %s1 = inlined_call_operand.hbm [shape: bf16[16,128], index: 1, kind: input, shape index: {}]
  %s2 = inlined_call_operand.vmem [shape: f32[1,128], index: 2, kind: input, shape index: {}]
  %s3 = inlined_call_operand.hbm [shape: bf16[128,128], index: 3, kind: input, shape index: {}]
  %s4 = inlined_call_operand.vmem [shape: f32[1,128], index: 4, kind: input, shape index: {}]
  %s5 = inlined_call_operand.hbm [shape: f32[128,128], index: 5, kind: input, shape index: {}]
  %s6 = inlined_call_operand.vmem [shape: f32[1,128], index: 6, kind: input, shape index: {}]
  %s7 = inlined_call_operand.hbm [shape: f32[8,128], index: 7, kind: output, shape index: {}]
  %s8 = sld [smem:[#allocation0]]
  $region54: #{tpu_custom_call.1} parent=0
    _
  %s10 = ssub.s32 1, %s8
  %s11 = scalar_select 0, %s10, %s8
  $region1: #{tpu_custom_call.1} parent=0
    #allocation2 [shape = 'u8[2048]{0}', space=vmem, size = 0x800, scoped, tag = 'input window, operand 0, single buffered']
    #allocation3 [shape = 's32[1]{0}', space=sflag, size = 0x4, scoped, tag = 'scoped memory for tpu_custom_call.1']
    #allocation4 [shape = 's32[1]{0}', space=sflag, size = 0x4, scoped, tag = 'scoped memory for tpu_custom_call.1']
    #allocation5 [shape = 'u8[4096]{0}', space=vmem, size = 0x1000, scoped, tag = 'input window, operand 1, single buffered']
    #allocation6 [shape = 's32[1]{0}', space=sflag, size = 0x4, scoped, tag = 'scoped memory for tpu_custom_call.1']
    #allocation7 [shape = 'u8[32768]{0}', space=vmem, size = 0x8000, scoped, tag = 'input window, operand 3, single buffered']
    #allocation8 [shape = 'u8[65536]{0}', space=vmem, size = 0x10000, scoped, tag = 'input window, operand 5, single buffered']
    #allocation9 [shape = 's32[1]{0}', space=sflag, size = 0x4, scoped, tag = 'scoped memory for tpu_custom_call.1']
    #allocation10 [shape = 'u8[4096]{0}', space=vmem, size = 0x1000, scoped, tag = 'output window, operand 0, single buffered']
    %12 = vsyncpa [#allocation3], 0
    %13 = vsyncpa [#allocation6], 0
    %14 = vsyncpa [#allocation9], 0
    %15 = vsyncpa [#allocation4], 0
    // Predicated region
    $region2: #{tpu_custom_call.1} parent=1 // pred_check
      _
    $region3: #{tpu_custom_call.1} parent=1 // pred_check_branch
      %17 = sbr.rel (0) target = $region5
    $region4: #{tpu_custom_call.1} parent=1 // pred_region
      %s19 = ssub.s32 64, 64
      %20 = vsyncadd [#allocation3], %s19
      %s22 = sshll.u32 [#allocation2], 4
      %s23 = int_to_ptr.vmem [resolvable:$true] %s22
      %25 = dma.hbm_to_vmem [thread:$0]  %s0, 64, %s23, [#allocation3]
    $region5: #{tpu_custom_call.1} parent=1 // pred_fallthru
      _
    // Predicated region
    $region6: #{tpu_custom_call.1} parent=1 // pred_check
      _
    $region7: #{tpu_custom_call.1} parent=1 // pred_check_branch
      %27 = sbr.rel (0) target = $region9
    $region8: #{tpu_custom_call.1} parent=1 // pred_region
      %s29 = ssub.s32 128, 128
      %30 = vsyncadd [#allocation6], %s29
      %s31 = sshll.u32 [#allocation5], 4
      %s32 = int_to_ptr.vmem [resolvable:$true] %s31
      %37 = dma.hbm_to_vmem [thread:$0]  %s1, 128, %s32, [#allocation6], 64, 64, 4
    $region9: #{tpu_custom_call.1} parent=1 // pred_fallthru
      _
    // Predicated region
    $region10: #{tpu_custom_call.1} parent=1 // pred_check
      _
    $region11: #{tpu_custom_call.1} parent=1 // pred_check_branch
      %39 = sbr.rel (0) target = $region13
    $region12: #{tpu_custom_call.1} parent=1 // pred_region
      _
    $region13: #{tpu_custom_call.1} parent=1 // pred_fallthru
      _
    // Predicated region
    $region14: #{tpu_custom_call.1} parent=1 // pred_check
      _
    $region15: #{tpu_custom_call.1} parent=1 // pred_check_branch
      %41 = sbr.rel (0) target = $region17
    $region16: #{tpu_custom_call.1} parent=1 // pred_region
      %s43 = ssub.s32 1024, 1024
      %44 = vsyncadd [#allocation6], %s43
      %s45 = sshll.u32 [#allocation7], 4
      %s46 = int_to_ptr.vmem [resolvable:$true] %s45
      %51 = dma.hbm_to_vmem [thread:$0]  %s3, 1024, %s46, [#allocation6], 64, 64, 4
    $region17: #{tpu_custom_call.1} parent=1 // pred_fallthru
      _
    // Predicated region
    $region18: #{tpu_custom_call.1} parent=1 // pred_check
      _
    $region19: #{tpu_custom_call.1} parent=1 // pred_check_branch
      %53 = sbr.rel (0) target = $region21
    $region20: #{tpu_custom_call.1} parent=1 // pred_region
      _
    $region21: #{tpu_custom_call.1} parent=1 // pred_fallthru
      _
    // Predicated region
    $region22: #{tpu_custom_call.1} parent=1 // pred_check
      _
    $region23: #{tpu_custom_call.1} parent=1 // pred_check_branch
      %55 = sbr.rel (0) target = $region25
    $region24: #{tpu_custom_call.1} parent=1 // pred_region
      %s57 = ssub.s32 2048, 2048
      %58 = vsyncadd [#allocation9], %s57
      %s59 = sshll.u32 [#allocation8], 4
      %s60 = int_to_ptr.vmem [resolvable:$true] %s59
      %65 = dma.hbm_to_vmem [thread:$0]  %s5, 2048, %s60, [#allocation9], 128, 128, 8
    $region25: #{tpu_custom_call.1} parent=1 // pred_fallthru
      _
    // Predicated region
    $region26: #{tpu_custom_call.1} parent=1 // pred_check
      _
    $region27: #{tpu_custom_call.1} parent=1 // pred_check_branch
      %67 = sbr.rel (0) target = $region29
    $region28: #{tpu_custom_call.1} parent=1 // pred_region
      _
    $region29: #{tpu_custom_call.1} parent=1 // pred_fallthru
      _
    // Predicated region
    $region30: #{tpu_custom_call.1} parent=1 // pred_check
      _
    $region31: #{tpu_custom_call.1} parent=1 // pred_check_branch
      %69 = sbr.rel (0) target = $region33
    $region32: #{tpu_custom_call.1} parent=1 // pred_region
      %70 = dma.done [#allocation3], 64
    $region33: #{tpu_custom_call.1} parent=1 // pred_fallthru
      _
    // Predicated region
    $region34: #{tpu_custom_call.1} parent=1 // pred_check
      _
    $region35: #{tpu_custom_call.1} parent=1 // pred_check_branch
      %72 = sbr.rel (0) target = $region37
    $region36: #{tpu_custom_call.1} parent=1 // pred_region
      %73 = dma.done [#allocation6], 128
    $region37: #{tpu_custom_call.1} parent=1 // pred_fallthru
      _
    // Predicated region
    $region38: #{tpu_custom_call.1} parent=1 // pred_check
      _
    $region39: #{tpu_custom_call.1} parent=1 // pred_check_branch
      %75 = sbr.rel (0) target = $region41
    $region40: #{tpu_custom_call.1} parent=1 // pred_region
      %76 = dma.done [#allocation6], 1024
    $region41: #{tpu_custom_call.1} parent=1 // pred_fallthru
      _
    // Predicated region
    $region42: #{tpu_custom_call.1} parent=1 // pred_check
      _
    $region43: #{tpu_custom_call.1} parent=1 // pred_check_branch
      %78 = sbr.rel (0) target = $region45
    $region44: #{tpu_custom_call.1} parent=1 // pred_region
      %79 = dma.done [#allocation9], 2048
    $region45: #{tpu_custom_call.1} parent=1 // pred_fallthru
      _
    %v81 = vld [vmem:[#allocation2] sm:$0xf]
    %v82 = vld [vmem:[#allocation5] sm:$0xf]
    %v83 = vld [vmem:[#allocation5 + $0x4] sm:$0xf]
    %v84 = vld [vmem:[%s2] sm:$0x1]
    %v86 = vlaneseq
    %v87 = vshrl.u32 %v86, 7
    %v88 = vsub.s32 0, %v87
    %v89 = vrot.slane %v84, %v88
    %v93 = vunpack.c.l.b16 %v82
    %v94 = vunpack.c.l.b16 %v83
    %v95 = vpack.c.b16 %v94, %v93
    %vm97 = vcmask 130048
    %v99 = vsel %vm97, %v81, 0
    %101 = vmatprep.subr.bf16.mxu0 0
    %102 = vmatpush1.bf16.msra.mxu0 %v95
    %103 = vmatprep.subr.bf16.mxu0 0
    %104 = vmatpush1.bf16.msra.mxu0 0
    %105 = vmatprep.subr.bf16.mxu0 0
    %106 = vmatpush1.bf16.msra.mxu0 0
    %107 = vmatprep.subr.bf16.mxu0 0
    %108 = vmatpush1.bf16.msra.mxu0 0
    %109 = vmatprep.subr.bf16.mxu0 0
    %110 = vmatpush1.bf16.msra.mxu0 0
    %111 = vmatprep.subr.bf16.mxu0 0
    %112 = vmatpush1.bf16.msra.mxu0 0
    %113 = vmatprep.subr.bf16.mxu0 0
    %114 = vmatpush1.bf16.msra.mxu0 0
    %115 = vmatprep.subr.bf16.mxu0 0
    %116 = vmatpush1.bf16.msra.mxu0 0
    %117 = vmatprep.subr.bf16.mxu0 0
    %118 = vmatpush1.bf16.msra.mxu0 0
    %119 = vmatprep.subr.bf16.mxu0 0
    %120 = vmatpush1.bf16.msra.mxu0 0
    %121 = vmatprep.subr.bf16.mxu0 0
    %122 = vmatpush1.bf16.msra.mxu0 0
    %123 = vmatprep.subr.bf16.mxu0 0
    %124 = vmatpush1.bf16.msra.mxu0 0
    %125 = vmatprep.subr.bf16.mxu0 0
    %126 = vmatpush1.bf16.msra.mxu0 0
    %127 = vmatprep.subr.bf16.mxu0 0
    %128 = vmatpush1.bf16.msra.mxu0 0
    %129 = vmatprep.subr.bf16.mxu0 0
    %130 = vmatpush1.bf16.msra.mxu0 0
    %131 = vmatprep.subr.bf16.mxu0 0
    %132 = vmatpush1.bf16.msra.mxu0 0
    %133 = vmatprep.mubr.bf16.mxu0 0
    %134 = vmatmul.mubr.bf16.gmra.mrb[0].mxu0 %v99
    %v135 = vpop.f32.mrb[0].mxu0
    %v136 = vadd.f32 %v89, %v135
    %v137 = vpop.f32.mrb[0].mxu0
    %v138 = vpop.f32.mrb[0].mxu0
    %v139 = vpop.f32.mrb[0].mxu0
    %140 = vdwg.mxu0
    %v141 = vmax.f32 %v136, 0.0
    %v142 = vld [vmem:[#allocation7] sm:$0xf]
    %v143 = vld [vmem:[#allocation7 + $0x4] sm:$0xf]
    %v144 = vld [vmem:[#allocation7 + $0x8] sm:$0xf]
    %v145 = vld [vmem:[#allocation7 + $0xc] sm:$0xf]
    %v146 = vld [vmem:[#allocation7 + $0x10] sm:$0xf]
    %v147 = vld [vmem:[#allocation7 + $0x14] sm:$0xf]
    %v148 = vld [vmem:[#allocation7 + $0x18] sm:$0xf]
    %v149 = vld [vmem:[#allocation7 + $0x1c] sm:$0xf]
    %v150 = vld [vmem:[#allocation7 + $0x20] sm:$0xf]
    %v151 = vld [vmem:[#allocation7 + $0x24] sm:$0xf]
    %v152 = vld [vmem:[#allocation7 + $0x28] sm:$0xf]
    %v153 = vld [vmem:[#allocation7 + $0x2c] sm:$0xf]
    %v154 = vld [vmem:[#allocation7 + $0x30] sm:$0xf]
    %v155 = vld [vmem:[#allocation7 + $0x34] sm:$0xf]
    %v156 = vld [vmem:[#allocation7 + $0x38] sm:$0xf]
    %v157 = vld [vmem:[#allocation7 + $0x3c] sm:$0xf]
    %v158 = vpack.c.bf16 %v141, %v141
    %v159 = vld [vmem:[%s4] sm:$0x1]
    %v161 = vlaneseq
    %v162 = vshrl.u32 %v161, 7
    %v163 = vsub.s32 0, %v162
    %v164 = vrot.slane %v159, %v163
    %v182 = vunpack.c.l.b16 %v142
    %v183 = vunpack.c.l.b16 %v143
    %v184 = vunpack.c.l.b16 %v144
    %v185 = vunpack.c.l.b16 %v145
    %v186 = vunpack.c.l.b16 %v146
    %v187 = vunpack.c.l.b16 %v147
    %v188 = vunpack.c.l.b16 %v148
    %v189 = vunpack.c.l.b16 %v149
    %v190 = vunpack.c.l.b16 %v150
    %v191 = vunpack.c.l.b16 %v151
    %v192 = vunpack.c.l.b16 %v152
    %v193 = vunpack.c.l.b16 %v153
    %v194 = vunpack.c.l.b16 %v154
    %v195 = vunpack.c.l.b16 %v155
    %v196 = vunpack.c.l.b16 %v156
    %v197 = vunpack.c.l.b16 %v157
    %v198 = vpack.c.b16 %v183, %v182
    %v199 = vpack.c.b16 %v185, %v184
    %v200 = vpack.c.b16 %v187, %v186
    %v201 = vpack.c.b16 %v189, %v188
    %v202 = vpack.c.b16 %v191, %v190
    %v203 = vpack.c.b16 %v193, %v192
    %v204 = vpack.c.b16 %v195, %v194
    %v205 = vpack.c.b16 %v197, %v196
    %214 = vmatprep.subr.bf16.mxu0 0
    %215 = vmatpush1.bf16.msra.mxu0 %v198
    %216 = vmatprep.subr.bf16.mxu0 0
    %217 = vmatpush1.bf16.msra.mxu0 %v199
    %218 = vmatprep.subr.bf16.mxu0 0
    %219 = vmatpush1.bf16.msra.mxu0 %v200
    %220 = vmatprep.subr.bf16.mxu0 0
    %221 = vmatpush1.bf16.msra.mxu0 %v201
    %222 = vmatprep.subr.bf16.mxu0 0
    %223 = vmatpush1.bf16.msra.mxu0 %v202
    %224 = vmatprep.subr.bf16.mxu0 0
    %225 = vmatpush1.bf16.msra.mxu0 %v203
    %226 = vmatprep.subr.bf16.mxu0 0
    %227 = vmatpush1.bf16.msra.mxu0 %v204
    %228 = vmatprep.subr.bf16.mxu0 0
    %229 = vmatpush1.bf16.msra.mxu0 %v205
    %230 = vmatprep.subr.bf16.mxu0 0
    %231 = vmatpush1.bf16.msra.mxu0 0
    %232 = vmatprep.subr.bf16.mxu0 0
    %233 = vmatpush1.bf16.msra.mxu0 0
    %234 = vmatprep.subr.bf16.mxu0 0
    %235 = vmatpush1.bf16.msra.mxu0 0
    %236 = vmatprep.subr.bf16.mxu0 0
    %237 = vmatpush1.bf16.msra.mxu0 0
    %238 = vmatprep.subr.bf16.mxu0 0
    %239 = vmatpush1.bf16.msra.mxu0 0
    %240 = vmatprep.subr.bf16.mxu0 0
    %241 = vmatpush1.bf16.msra.mxu0 0
    %242 = vmatprep.subr.bf16.mxu0 0
    %243 = vmatpush1.bf16.msra.mxu0 0
    %244 = vmatprep.subr.bf16.mxu0 0
    %245 = vmatpush1.bf16.msra.mxu0 0
    %246 = vmatprep.mubr.bf16.mxu0 0
    %247 = vmatmul.mubr.bf16.gmra.mrb[0].mxu0 %v158
    %v248 = vpop.f32.mrb[0].mxu0
    %v249 = vadd.f32 %v164, %v248
    %v250 = vpop.f32.mrb[0].mxu0
    %v251 = vpop.f32.mrb[0].mxu0
    %v252 = vpop.f32.mrb[0].mxu0
    %253 = vdwg.mxu0
    %v254 = vmax.f32 %v249, 0.0
    %v255 = vld [vmem:[#allocation8] sm:$0xff]
    %v256 = vld [vmem:[#allocation8 + $0x8] sm:$0xff]
    %v257 = vld [vmem:[#allocation8 + $0x10] sm:$0xff]
    %v258 = vld [vmem:[#allocation8 + $0x18] sm:$0xff]
    %v259 = vld [vmem:[#allocation8 + $0x20] sm:$0xff]
    %v260 = vld [vmem:[#allocation8 + $0x28] sm:$0xff]
    %v261 = vld [vmem:[#allocation8 + $0x30] sm:$0xff]
    %v262 = vld [vmem:[#allocation8 + $0x38] sm:$0xff]
    %v263 = vld [vmem:[#allocation8 + $0x40] sm:$0xff]
    %v264 = vld [vmem:[#allocation8 + $0x48] sm:$0xff]
    %v265 = vld [vmem:[#allocation8 + $0x50] sm:$0xff]
    %v266 = vld [vmem:[#allocation8 + $0x58] sm:$0xff]
    %v267 = vld [vmem:[#allocation8 + $0x60] sm:$0xff]
    %v268 = vld [vmem:[#allocation8 + $0x68] sm:$0xff]
    %v269 = vld [vmem:[#allocation8 + $0x70] sm:$0xff]
    %v270 = vld [vmem:[#allocation8 + $0x78] sm:$0xff]
    %v271 = vld [vmem:[%s6] sm:$0x1]
    %v273 = vlaneseq
    %v274 = vshrl.u32 %v273, 7
    %v275 = vsub.s32 0, %v274
    %v276 = vrot.slane %v271, %v275
    %278 = vmatprep.subr.mxu0 0.0
    %279 = vmatpush1.msra.mxu0 %v255
    %280 = vmatprep.subr.mxu0 0.0
    %281 = vmatpush1.msra.mxu0 %v256
    %282 = vmatprep.subr.mxu0 0.0
    %283 = vmatpush1.msra.mxu0 %v257
    %284 = vmatprep.subr.mxu0 0.0
    %285 = vmatpush1.msra.mxu0 %v258
    %286 = vmatprep.subr.mxu0 0.0
    %287 = vmatpush1.msra.mxu0 %v259
    %288 = vmatprep.subr.mxu0 0.0
    %289 = vmatpush1.msra.mxu0 %v260
    %290 = vmatprep.subr.mxu0 0.0
    %291 = vmatpush1.msra.mxu0 %v261
    %292 = vmatprep.subr.mxu0 0.0
    %293 = vmatpush1.msra.mxu0 %v262
    %294 = vmatprep.subr.mxu0 0.0
    %295 = vmatpush1.msra.mxu0 %v263
    %296 = vmatprep.subr.mxu0 0.0
    %297 = vmatpush1.msra.mxu0 %v264
    %298 = vmatprep.subr.mxu0 0.0
    %299 = vmatpush1.msra.mxu0 %v265
    %300 = vmatprep.subr.mxu0 0.0
    %301 = vmatpush1.msra.mxu0 %v266
    %302 = vmatprep.subr.mxu0 0.0
    %303 = vmatpush1.msra.mxu0 %v267
    %304 = vmatprep.subr.mxu0 0.0
    %305 = vmatpush1.msra.mxu0 %v268
    %306 = vmatprep.subr.mxu0 0.0
    %307 = vmatpush1.msra.mxu0 %v269
    %308 = vmatprep.subr.mxu0 0.0
    %309 = vmatpush1.msra.mxu0 %v270
    %310 = vmatprep.subr.mxu0 0.0
    %311 = vmatpush1.msra.mxu0 0.0
    %312 = vmatprep.subr.mxu0 0.0
    %313 = vmatpush1.msra.mxu0 0.0
    %314 = vmatprep.subr.mxu0 0.0
    %315 = vmatpush1.msra.mxu0 0.0
    %316 = vmatprep.subr.mxu0 0.0
    %317 = vmatpush1.msra.mxu0 0.0
    %318 = vmatprep.subr.mxu0 0.0
    %319 = vmatpush1.msra.mxu0 0.0
    %320 = vmatprep.subr.mxu0 0.0
    %321 = vmatpush1.msra.mxu0 0.0
    %322 = vmatprep.subr.mxu0 0.0
    %323 = vmatpush1.msra.mxu0 0.0
    %324 = vmatprep.subr.mxu0 0.0
    %325 = vmatpush1.msra.mxu0 0.0
    %326 = vmatprep.subr.mxu0 0.0
    %327 = vmatpush1.msra.mxu0 0.0
    %328 = vmatprep.subr.mxu0 0.0
    %329 = vmatpush1.msra.mxu0 0.0
    %330 = vmatprep.subr.mxu0 0.0
    %331 = vmatpush1.msra.mxu0 0.0
    %332 = vmatprep.subr.mxu0 0.0
    %333 = vmatpush1.msra.mxu0 0.0
    %334 = vmatprep.subr.mxu0 0.0
    %335 = vmatpush1.msra.mxu0 0.0
    %336 = vmatprep.subr.mxu0 0.0
    %337 = vmatpush1.msra.mxu0 0.0
    %338 = vmatprep.subr.mxu0 0.0
    %339 = vmatpush1.msra.mxu0 0.0
    %340 = vmatprep.subr.mxu0 0.0
    %341 = vmatpush1.msra.mxu0 0.0
    %342 = vmatprep.mubr.f32.mxu0 0.0
    %343 = vmatmul.mubr.f32.gmra.mrb[0].mxu0 %v254
    %v344 = vpop.f32.mrb[0].mxu0
    %v345 = vadd.f32 %v276, %v344
    %v346 = vpop.f32.mrb[0].mxu0
    %347 = vdwg.mxu0
    %348 = vst [vmem:[#allocation10] sm:$0xff] %v345
    // Predicated region
    $region46: #{tpu_custom_call.1} parent=1 // pred_check
      _
    $region47: #{tpu_custom_call.1} parent=1 // pred_check_branch
      %350 = sbr.rel (0) target = $region49
    $region48: #{tpu_custom_call.1} parent=1 // pred_region
      %s352 = ssub.s32 128, 128
      %353 = vsyncadd [#allocation4], %s352
      %s355 = sshll.u32 [#allocation10], 4
      %s356 = int_to_ptr.vmem [resolvable:$true] %s355
      %358 = dma.vmem_to_hbm [thread:$0]  %s356, 128, %s7, [#allocation4]
    $region49: #{tpu_custom_call.1} parent=1 // pred_fallthru
      _
    // Predicated region
    $region50: #{tpu_custom_call.1} parent=1 // pred_check
      _
    $region51: #{tpu_custom_call.1} parent=1 // pred_check_branch
      %360 = sbr.rel (0) target = $region53
    $region52: #{tpu_custom_call.1} parent=1 // pred_region
      %361 = dma.done [#allocation4], 128
    $region53: #{tpu_custom_call.1} parent=1 // pred_fallthru
      _
    %362 = vsyncpa [#allocation3], 1
    %363 = vsyncpa [#allocation6], 1
    %364 = vsyncpa [#allocation9], 1
    %365 = vsyncpa [#allocation4], 1

</llo_original>
